<compile_context>
chip_gen: v7x
topology: tpu7x:2x2x1
jax: 0.10.0
libtpu: 0.0.40
codegen_flags: <defaults>
</compile_context>

<pallas_src>
import jax
import jax.numpy as jnp
from jax import lax
from jax.experimental import pallas as pl
from jax.experimental.pallas import tpu as pltpu

# ---- problem sizes (small, consistent with the module) ----
D = 8             # dense / per-sparse-feature embedding dim
F = 2             # number of sparse features ("f1", "f2")
FD = F * D        # total sparse width (KeyedTensor.values() width)
N = D + FD        # fm_in_features = 24
DI = 16           # deep_fm_dimension
OUT_W = D + DI + 1  # final row width = 25
B = 64            # batch


def _fm_interaction_kernel(xd_ref, xs_ref, wd_ref, ws_ref, b_ref, keep_ref, oh_ref, out_ref):
    # xd_ref  : (TM, D)       dense features tile
    # xs_ref  : (TM, FD)      sparse (KeyedTensor values) tile
    # wd_ref  : (D, OUT_W)    [ I_D | W_dense_rows | 0 ]  (dense passthrough + shifted weights)
    # ws_ref  : (FD, OUT_W)   [ 0   | W_sparse_rows| 0 ]
    # b_ref   : (1, OUT_W)    [ 0   | bias         | 0 ]
    # keep_ref: (1, OUT_W)    1 on dense + fm lanes, 0 on deep lanes (lane-masked ReLU)
    # oh_ref  : (1, OUT_W)    one-hot at the fm lane (lane D+DI)
    # out_ref : (TM, OUT_W)   final [dense | deep | fm] rows
    xd = xd_ref[...]
    xs = xs_ref[...]

    # One fused layout straight off the MXU:
    #   pre[:, :D]     = xd           (identity columns in W_d, zeros in W_s / bias)
    #   pre[:, D:D+DI] = x @ W + b    (deep pre-activation)
    #   pre[:, D+DI]   = 0
    pre = jnp.dot(xd, wd_ref[...], preferred_element_type=jnp.float32)
    pre = pre + jnp.dot(xs, ws_ref[...], preferred_element_type=jnp.float32)
    pre = pre + b_ref[...]

    # Lane-masked ReLU: keep=1 -> max(pre, pre) = pre (dense/fm lanes untouched),
    #                   keep=0 -> max(pre, 0)   = ReLU (deep lanes).
    act = jnp.maximum(pre, pre * keep_ref[...])

    # Factorization-machine cross term, f32 (XLU reductions ride the otherwise-idle slot).
    s = jnp.sum(xd, axis=1, keepdims=True) + jnp.sum(xs, axis=1, keepdims=True)
    ss = jnp.sum(xd * xd, axis=1, keepdims=True) + jnp.sum(xs * xs, axis=1, keepdims=True)
    fm = 0.5 * (s * s - ss)                                   # (TM, 1)

    # Drop fm into its lane and store the whole row slab in one go.
    out_ref[...] = act + fm * oh_ref[...]


def prepare_fm_interaction_params(weight, bias, *, d):
    """One-time parameter prep (call at init, NOT per forward).

    weight: (N, DI) Linear weight in (in, out) layout (nn.Linear stores (out, in) -> transpose
    when porting real module weights); bias: (DI,).  Returns padded/shifted params laid out so
    the kernel emits the final [dense | deep | fm] rows directly."""
    n, di = weight.shape
    fd = n - d
    out_w = d + di + 1
    wdt = weight.dtype
    # dense weight rows shifted to lanes D..D+DI-1; identity block = dense passthrough.
    w_d = (jnp.zeros((d, out_w), wdt)
           .at[:, d:d + di].set(weight[:d])
           .at[:, :d].set(jnp.eye(d, dtype=wdt)))
    # sparse weight rows shifted to lanes D..D+DI-1.
    w_s = jnp.zeros((fd, out_w), wdt).at[:, d:d + di].set(weight[d:])
    # bias row, zero outside the deep lanes.
    b_row = jnp.zeros((1, out_w), wdt).at[0, d:d + di].set(bias)
    # keep-mask: 1 where the ReLU must NOT apply (dense passthrough + fm lane), 0 on deep lanes.
    keep = jnp.ones((1, out_w), jnp.float32).at[0, d:d + di].set(0.0)
    # one-hot selecting the fm lane.
    onehot = jnp.zeros((1, out_w), jnp.float32).at[0, d + di].set(1.0)
    return w_d, w_s, b_row, keep, onehot


def fm_interaction_arch(dense_features, sparse_values, params, *, max_tile=512):
    """dense_features: (B, D); sparse_values: (B, F*D) (KeyedTensor.values(); per-feature slice
    is sparse_values[:, f*D:(f+1)*D]); params from prepare_fm_interaction_params.
    Returns (B, D + DI + 1) = cat([dense, relu(x@W+b), fm], axis=1)."""
    w_d, w_s, b_row, keep, onehot = params
    b, d = dense_features.shape
    fd = sparse_values.shape[1]
    out_w = w_d.shape[1]
    assert w_d.shape[0] == d and w_s.shape[0] == fd

    if b <= max_tile:
        # Single grid step: whole batch is one block (no per-step ramp overhead).
        tm, b_pad = b, b
        dense_p, sparse_p = dense_features, sparse_values
    else:
        tm = max_tile
        b_pad = pl.cdiv(b, tm) * tm
        pad = b_pad - b
        dense_p = jnp.pad(dense_features, ((0, pad), (0, 0)))
        sparse_p = jnp.pad(sparse_values, ((0, pad), (0, 0)))
    grid_b = b_pad // tm

    slab = pl.pallas_call(
        _fm_interaction_kernel,
        out_shape=jax.ShapeDtypeStruct((b_pad, out_w), jnp.float32),
        grid_spec=pltpu.PrefetchScalarGridSpec(
            num_scalar_prefetch=0,
            grid=(grid_b,),
            in_specs=[
                pl.BlockSpec((tm, d), lambda i: (i, 0)),       # dense tile
                pl.BlockSpec((tm, fd), lambda i: (i, 0)),      # sparse tile
                pl.BlockSpec((d, out_w), lambda i: (0, 0)),    # W_d (VMEM-resident)
                pl.BlockSpec((fd, out_w), lambda i: (0, 0)),   # W_s (VMEM-resident)
                pl.BlockSpec((1, out_w), lambda i: (0, 0)),    # bias row (resident)
                pl.BlockSpec((1, out_w), lambda i: (0, 0)),    # ReLU keep-mask (resident)
                pl.BlockSpec((1, out_w), lambda i: (0, 0)),    # fm one-hot (resident)
            ],
            out_specs=pl.BlockSpec((tm, out_w), lambda i: (i, 0)),
        ),
        compiler_params=pltpu.CompilerParams(
            dimension_semantics=("parallel",) if grid_b > 1 else ("arbitrary",)),
    )(dense_p, sparse_p, w_d, w_s, b_row, keep, onehot)

    return slab if b_pad == b else slab[:b]


def _reference(dense_features, sparse_values, weight, bias):
    x = jnp.concatenate([dense_features, sparse_values], axis=1)
    deep = jnp.maximum(
        jnp.dot(x, weight, precision=lax.Precision.HIGHEST) + bias[None, :], 0.0)
    s = jnp.sum(x, axis=1, keepdims=True)
    ss = jnp.sum(x * x, axis=1, keepdims=True)
    fm = 0.5 * (s * s - ss)
    return jnp.concatenate([dense_features, deep, fm], axis=1)


if __name__ == "__main__":
    key = jax.random.PRNGKey(0)
    k_dense, k_sparse, k_w, k_b = jax.random.split(key, 4)

    dense_features = jax.random.uniform(k_dense, (B, D), dtype=jnp.float32)
    # KeyedTensor values: (B, F*D); per-feature slices are sparse_values[:, f*D:(f+1)*D]
    sparse_values = jax.random.uniform(k_sparse, (B, FD), dtype=jnp.float32)

    # nn.Linear(fm_in_features, deep_fm_dimension) parameters, deterministic init,
    # stored here in (in, out) layout.
    bound = 1.0 / (N ** 0.5)
    weight = jax.random.uniform(k_w, (N, DI), dtype=jnp.float32,
                                minval=-bound, maxval=bound)
    bias = jax.random.uniform(k_b, (DI,), dtype=jnp.float32,
                              minval=-bound, maxval=bound)

    # One-time parameter prep (off the per-forward path), jitted forward.
    params = prepare_fm_interaction_params(weight, bias, d=D)
    fwd = jax.jit(fm_interaction_arch)

    out = jax.block_until_ready(fwd(dense_features, sparse_values, params))

    ref = _reference(dense_features, sparse_values, weight, bias)
    assert out.shape == (B, D + DI + 1), out.shape
    assert jnp.allclose(out, ref, atol=1e-4, rtol=1e-4), float(jnp.max(jnp.abs(out - ref)))

    print("KERNEL_OK")
</pallas_src>

<mosaic_0001>
module attributes {stable_mosaic.version = 11 : i64} {
  func.func @_fm_interaction_kernel(%arg0: i32, %arg1: memref<64x8xf32, #tpu.memory_space<vmem>>, %arg2: memref<64x16xf32, #tpu.memory_space<vmem>>, %arg3: memref<8x25xf32, #tpu.memory_space<vmem>>, %arg4: memref<16x25xf32, #tpu.memory_space<vmem>>, %arg5: memref<1x25xf32, #tpu.memory_space<vmem>>, %arg6: memref<1x25xf32, #tpu.memory_space<vmem>>, %arg7: memref<1x25xf32, #tpu.memory_space<vmem>>, %arg8: memref<64x25xf32, #tpu.memory_space<vmem>>) attributes {dimension_semantics = [#tpu.dimension_semantics<arbitrary>], iteration_bounds = array<i64: 1>, scalar_prefetch = 0 : i64, scratch_operands = 0 : i64, tpu.core_type = #tpu.core_type<tc>, window_params = [{transform_indices = @transform_0, window_bounds = array<i64: 64, 8>}, {transform_indices = @transform_1, window_bounds = array<i64: 64, 16>}, {pipeline_mode = #tpu.pipeline_mode<synchronous>, transform_indices = @transform_2, window_bounds = array<i64: 8, 25>}, {pipeline_mode = #tpu.pipeline_mode<synchronous>, transform_indices = @transform_3, window_bounds = array<i64: 16, 25>}, {pipeline_mode = #tpu.pipeline_mode<synchronous>, transform_indices = @transform_4, window_bounds = array<i64: 1, 25>}, {pipeline_mode = #tpu.pipeline_mode<synchronous>, transform_indices = @transform_5, window_bounds = array<i64: 1, 25>}, {pipeline_mode = #tpu.pipeline_mode<synchronous>, transform_indices = @transform_6, window_bounds = array<i64: 1, 25>}, {transform_indices = @transform_7, window_bounds = array<i64: 64, 25>}]} {
    %c0 = arith.constant 0 : index
    %c0_0 = arith.constant 0 : index
    %0 = vector.load %arg1[%c0, %c0_0] : memref<64x8xf32, #tpu.memory_space<vmem>>, vector<64x8xf32>
    %c0_1 = arith.constant 0 : index
    %c0_2 = arith.constant 0 : index
    %1 = vector.load %arg2[%c0_1, %c0_2] : memref<64x16xf32, #tpu.memory_space<vmem>>, vector<64x16xf32>
    %c0_3 = arith.constant 0 : index
    %c0_4 = arith.constant 0 : index
    %2 = vector.load %arg3[%c0_3, %c0_4] : memref<8x25xf32, #tpu.memory_space<vmem>>, vector<8x25xf32>
    %cst = arith.constant dense<0.000000e+00> : vector<64x25xf32>
    %3 = tpu.matmul %0, %2, %cst {dimension_numbers = #tpu.dot_dimension_numbers<[1], [0], [0], [1], [0, 0, 1, 1], [], []>} : vector<64x8xf32>, vector<8x25xf32>, vector<64x25xf32> -> vector<64x25xf32>
    %c0_5 = arith.constant 0 : index
    %c0_6 = arith.constant 0 : index
    %4 = vector.load %arg4[%c0_5, %c0_6] : memref<16x25xf32, #tpu.memory_space<vmem>>, vector<16x25xf32>
    %cst_7 = arith.constant dense<0.000000e+00> : vector<64x25xf32>
    %5 = tpu.matmul %1, %4, %cst_7 {dimension_numbers = #tpu.dot_dimension_numbers<[1], [0], [0], [1], [0, 0, 1, 1], [], []>} : vector<64x16xf32>, vector<16x25xf32>, vector<64x25xf32> -> vector<64x25xf32>
    %6 = arith.addf %3, %5 : vector<64x25xf32>
    %c0_8 = arith.constant 0 : index
    %c0_9 = arith.constant 0 : index
    %7 = vector.load %arg5[%c0_8, %c0_9] : memref<1x25xf32, #tpu.memory_space<vmem>>, vector<1x25xf32>
    %8 = vector.broadcast %7 : vector<1x25xf32> to vector<64x25xf32>
    %9 = arith.addf %6, %8 : vector<64x25xf32>
    %c0_10 = arith.constant 0 : index
    %c0_11 = arith.constant 0 : index
    %10 = vector.load %arg6[%c0_10, %c0_11] : memref<1x25xf32, #tpu.memory_space<vmem>>, vector<1x25xf32>
    %11 = vector.broadcast %10 : vector<1x25xf32> to vector<64x25xf32>
    %12 = arith.mulf %9, %11 : vector<64x25xf32>
    %13 = arith.maximumf %9, %12 : vector<64x25xf32>
    %cst_12 = arith.constant dense<0.000000e+00> : vector<64xf32>
    %14 = vector.multi_reduction <add>, %0, %cst_12 [1] : vector<64x8xf32> to vector<64xf32>
    %15 = vector.shape_cast %14 : vector<64xf32> to vector<64x1xf32>
    %cst_13 = arith.constant dense<0.000000e+00> : vector<64xf32>
    %16 = vector.multi_reduction <add>, %1, %cst_13 [1] : vector<64x16xf32> to vector<64xf32>
    %17 = vector.shape_cast %16 : vector<64xf32> to vector<64x1xf32>
    %18 = arith.addf %15, %17 : vector<64x1xf32>
    %19 = arith.mulf %0, %0 : vector<64x8xf32>
    %cst_14 = arith.constant dense<0.000000e+00> : vector<64xf32>
    %20 = vector.multi_reduction <add>, %19, %cst_14 [1] : vector<64x8xf32> to vector<64xf32>
    %21 = vector.shape_cast %20 : vector<64xf32> to vector<64x1xf32>
    %22 = arith.mulf %1, %1 : vector<64x16xf32>
    %cst_15 = arith.constant dense<0.000000e+00> : vector<64xf32>
    %23 = vector.multi_reduction <add>, %22, %cst_15 [1] : vector<64x16xf32> to vector<64xf32>
    %24 = vector.shape_cast %23 : vector<64xf32> to vector<64x1xf32>
    %25 = arith.addf %21, %24 : vector<64x1xf32>
    %26 = arith.mulf %18, %18 : vector<64x1xf32>
    %27 = arith.subf %26, %25 : vector<64x1xf32>
    %cst_16 = arith.constant 5.000000e-01 : f32
    %28 = vector.broadcast %cst_16 : f32 to vector<64x1xf32>
    %29 = arith.mulf %28, %27 : vector<64x1xf32>
    %c0_17 = arith.constant 0 : index
    %c0_18 = arith.constant 0 : index
    %30 = vector.load %arg7[%c0_17, %c0_18] : memref<1x25xf32, #tpu.memory_space<vmem>>, vector<1x25xf32>
    %31 = vector.broadcast %29 : vector<64x1xf32> to vector<64x25xf32>
    %32 = vector.broadcast %30 : vector<1x25xf32> to vector<64x25xf32>
    %33 = arith.mulf %31, %32 : vector<64x25xf32>
    %34 = arith.addf %13, %33 : vector<64x25xf32>
    %c0_19 = arith.constant 0 : index
    %c0_20 = arith.constant 0 : index
    %35 = vector.load %arg8[%c0_19, %c0_20] : memref<64x25xf32, #tpu.memory_space<vmem>>, vector<64x25xf32>
    tpu.vector_store %arg8[%c0_19, %c0_20], %34 {strides = array<i32>} : memref<64x25xf32, #tpu.memory_space<vmem>>, vector<64x25xf32>,
    return
  }
  func.func @transform_0(%arg0: i32) -> (i32, i32) {
    %c0_i32 = arith.constant 0 : i32
    %c0_i32_0 = arith.constant 0 : i32
    return %arg0, %c0_i32 : i32, i32
  }
  func.func @transform_1(%arg0: i32) -> (i32, i32) {
    %c0_i32 = arith.constant 0 : i32
    %c0_i32_0 = arith.constant 0 : i32
    return %arg0, %c0_i32 : i32, i32
  }
  func.func @transform_2(%arg0: i32) -> (i32, i32) {
    %c0_i32 = arith.constant 0 : i32
    %c0_i32_0 = arith.constant 0 : i32
    %c0_i32_1 = arith.constant 0 : i32
    return %c0_i32, %c0_i32_0 : i32, i32
  }
  func.func @transform_3(%arg0: i32) -> (i32, i32) {
    %c0_i32 = arith.constant 0 : i32
    %c0_i32_0 = arith.constant 0 : i32
    %c0_i32_1 = arith.constant 0 : i32
    return %c0_i32, %c0_i32_0 : i32, i32
  }
  func.func @transform_4(%arg0: i32) -> (i32, i32) {
    %c0_i32 = arith.constant 0 : i32
    %c0_i32_0 = arith.constant 0 : i32
    %c0_i32_1 = arith.constant 0 : i32
    return %c0_i32, %c0_i32_0 : i32, i32
  }
  func.func @transform_5(%arg0: i32) -> (i32, i32) {
    %c0_i32 = arith.constant 0 : i32
    %c0_i32_0 = arith.constant 0 : i32
    %c0_i32_1 = arith.constant 0 : i32
    return %c0_i32, %c0_i32_0 : i32, i32
  }
  func.func @transform_6(%arg0: i32) -> (i32, i32) {
    %c0_i32 = arith.constant 0 : i32
    %c0_i32_0 = arith.constant 0 : i32
    %c0_i32_1 = arith.constant 0 : i32
    return %c0_i32, %c0_i32_0 : i32, i32
  }
  func.func @transform_7(%arg0: i32) -> (i32, i32) {
    %c0_i32 = arith.constant 0 : i32
    %c0_i32_0 = arith.constant 0 : i32
    return %arg0, %c0_i32 : i32, i32
  }
}

</mosaic_0001>

<llo_original>
// kernel: fm_interaction_arch.1
$region0: #{fm_interaction_arch.1}
  #allocation0 [shape = 'u32[]', space=smem, size = 0x4, offset = 0x4, fixed_abs, tag = 'smem constant byte address 0x4 - core index']
  #allocation1 [shape = 'u32[144,128]{1,0:T(1,128)}', space=vmem, size = 0x12000, scoped, tag = 'internal scratch']
  %s0 = inlined_call_operand.vmem [shape: f32[64,8], index: 0, kind: input, shape index: {}]
  %s1 = inlined_call_operand.vmem [shape: f32[64,16], index: 1, kind: input, shape index: {}]
  %s2 = inlined_call_operand.vmem [shape: f32[8,25], index: 2, kind: input, shape index: {}]
  %s3 = inlined_call_operand.vmem [shape: f32[16,25], index: 3, kind: input, shape index: {}]
  %s4 = inlined_call_operand.vmem [shape: f32[1,25], index: 4, kind: input, shape index: {}]
  %s5 = inlined_call_operand.vmem [shape: f32[1,25], index: 5, kind: input, shape index: {}]
  %s6 = inlined_call_operand.vmem [shape: f32[1,25], index: 6, kind: input, shape index: {}]
  %s7 = inlined_call_operand.vmem [shape: f32[64,25], index: 7, kind: output, shape index: {}]
  %s8 = sld [smem:[#allocation0]]
  $region38: #{fm_interaction_arch.1} parent=0
    _
  %s10 = ssub.s32 1, %s8
  %s11 = scalar_select 0, %s10, %s8
  // Predicated region
  $region2: #{fm_interaction_arch.1} parent=0 // pred_check
    _
  $region3: #{fm_interaction_arch.1} parent=0 // pred_check_branch
    %13 = sbr.rel (0) target = $region5
  $region4: #{fm_interaction_arch.1} parent=0 // pred_region
    _
  $region5: #{fm_interaction_arch.1} parent=0 // pred_fallthru
    _
  // Predicated region
  $region6: #{fm_interaction_arch.1} parent=0 // pred_check
    _
  $region7: #{fm_interaction_arch.1} parent=0 // pred_check_branch
    %15 = sbr.rel (0) target = $region9
  $region8: #{fm_interaction_arch.1} parent=0 // pred_region
    _
  $region9: #{fm_interaction_arch.1} parent=0 // pred_fallthru
    _
  // Predicated region
  $region10: #{fm_interaction_arch.1} parent=0 // pred_check
    _
  $region11: #{fm_interaction_arch.1} parent=0 // pred_check_branch
    %17 = sbr.rel (0) target = $region13
  $region12: #{fm_interaction_arch.1} parent=0 // pred_region
    _
  $region13: #{fm_interaction_arch.1} parent=0 // pred_fallthru
    _
  // Predicated region
  $region14: #{fm_interaction_arch.1} parent=0 // pred_check
    _
  $region15: #{fm_interaction_arch.1} parent=0 // pred_check_branch
    %19 = sbr.rel (0) target = $region17
  $region16: #{fm_interaction_arch.1} parent=0 // pred_region
    _
  $region17: #{fm_interaction_arch.1} parent=0 // pred_fallthru
    _
  // Predicated region
  $region18: #{fm_interaction_arch.1} parent=0 // pred_check
    _
  $region19: #{fm_interaction_arch.1} parent=0 // pred_check_branch
    %21 = sbr.rel (0) target = $region21
  $region20: #{fm_interaction_arch.1} parent=0 // pred_region
    _
  $region21: #{fm_interaction_arch.1} parent=0 // pred_fallthru
    _
  // Predicated region
  $region22: #{fm_interaction_arch.1} parent=0 // pred_check
    _
  $region23: #{fm_interaction_arch.1} parent=0 // pred_check_branch
    %23 = sbr.rel (0) target = $region25
  $region24: #{fm_interaction_arch.1} parent=0 // pred_region
    _
  $region25: #{fm_interaction_arch.1} parent=0 // pred_fallthru
    _
  // Predicated region
  $region26: #{fm_interaction_arch.1} parent=0 // pred_check
    _
  $region27: #{fm_interaction_arch.1} parent=0 // pred_check_branch
    %25 = sbr.rel (0) target = $region29
  $region28: #{fm_interaction_arch.1} parent=0 // pred_region
    _
  $region29: #{fm_interaction_arch.1} parent=0 // pred_fallthru
    _
  %v26 = vld [vmem:[%s0] sm:$0xff]
  %v27 = vld [vmem:[%s0 + $0x8] sm:$0xff]
  %v28 = vld [vmem:[%s0 + $0x10] sm:$0xff]
  %v29 = vld [vmem:[%s0 + $0x18] sm:$0xff]
  %v30 = vld [vmem:[%s0 + $0x20] sm:$0xff]
  %v31 = vld [vmem:[%s0 + $0x28] sm:$0xff]
  %v32 = vld [vmem:[%s0 + $0x30] sm:$0xff]
  %v33 = vld [vmem:[%s0 + $0x38] sm:$0xff]
  %v34 = vld [vmem:[%s1] sm:$0xff]
  %v35 = vld [vmem:[%s1 + $0x8] sm:$0xff]
  %v36 = vld [vmem:[%s1 + $0x10] sm:$0xff]
  %v37 = vld [vmem:[%s1 + $0x18] sm:$0xff]
  %v38 = vld [vmem:[%s1 + $0x20] sm:$0xff]
  %v39 = vld [vmem:[%s1 + $0x28] sm:$0xff]
  %v40 = vld [vmem:[%s1 + $0x30] sm:$0xff]
  %v41 = vld [vmem:[%s1 + $0x38] sm:$0xff]
  %v42 = vld [vmem:[%s2] sm:$0xff]
  %v43 = vld [vmem:[%s3] sm:$0xff]
  %v44 = vld [vmem:[%s3 + $0x8] sm:$0xff]
  %vm45 = vcmask 130048
  %v47 = vsel %vm45, %v34, 0
  %v50 = vsel %vm45, %v35, 0
  %v53 = vsel %vm45, %v36, 0
  %v56 = vsel %vm45, %v37, 0
  %v59 = vsel %vm45, %v38, 0
  %v62 = vsel %vm45, %v39, 0
  %v65 = vsel %vm45, %v40, 0
  %v68 = vsel %vm45, %v41, 0
  %70 = vmatprep.subr.mxu0 0.0
  %71 = vmatpush1.msra.mxu0 %v43
  %72 = vmatprep.subr.mxu0 0.0
  %73 = vmatpush1.msra.mxu0 %v44
  %74 = vmatprep.subr.mxu0 0.0
  %75 = vmatpush1.msra.mxu0 0.0
  %76 = vmatprep.subr.mxu0 0.0
  %77 = vmatpush1.msra.mxu0 0.0
  %78 = vmatprep.subr.mxu0 0.0
  %79 = vmatpush1.msra.mxu0 0.0
  %80 = vmatprep.subr.mxu0 0.0
  %81 = vmatpush1.msra.mxu0 0.0
  %82 = vmatprep.subr.mxu0 0.0
  %83 = vmatpush1.msra.mxu0 0.0
  %84 = vmatprep.subr.mxu0 0.0
  %85 = vmatpush1.msra.mxu0 0.0
  %86 = vmatprep.subr.mxu0 0.0
  %87 = vmatpush1.msra.mxu0 0.0
  %88 = vmatprep.subr.mxu0 0.0
  %89 = vmatpush1.msra.mxu0 0.0
  %90 = vmatprep.subr.mxu0 0.0
  %91 = vmatpush1.msra.mxu0 0.0
  %92 = vmatprep.subr.mxu0 0.0
  %93 = vmatpush1.msra.mxu0 0.0
  %94 = vmatprep.subr.mxu0 0.0
  %95 = vmatpush1.msra.mxu0 0.0
  %96 = vmatprep.subr.mxu0 0.0
  %97 = vmatpush1.msra.mxu0 0.0
  %98 = vmatprep.subr.mxu0 0.0
  %99 = vmatpush1.msra.mxu0 0.0
  %100 = vmatprep.subr.mxu0 0.0
  %101 = vmatpush1.msra.mxu0 0.0
  %102 = vmatprep.subr.mxu0 0.0
  %103 = vmatpush1.msra.mxu0 0.0
  %104 = vmatprep.subr.mxu0 0.0
  %105 = vmatpush1.msra.mxu0 0.0
  %106 = vmatprep.subr.mxu0 0.0
  %107 = vmatpush1.msra.mxu0 0.0
  %108 = vmatprep.subr.mxu0 0.0
  %109 = vmatpush1.msra.mxu0 0.0
  %110 = vmatprep.subr.mxu0 0.0
  %111 = vmatpush1.msra.mxu0 0.0
  %112 = vmatprep.subr.mxu0 0.0
  %113 = vmatpush1.msra.mxu0 0.0
  %114 = vmatprep.subr.mxu0 0.0
  %115 = vmatpush1.msra.mxu0 0.0
  %116 = vmatprep.subr.mxu0 0.0
  %117 = vmatpush1.msra.mxu0 0.0
  %118 = vmatprep.subr.mxu0 0.0
  %119 = vmatpush1.msra.mxu0 0.0
  %120 = vmatprep.subr.mxu0 0.0
  %121 = vmatpush1.msra.mxu0 0.0
  %122 = vmatprep.subr.mxu0 0.0
  %123 = vmatpush1.msra.mxu0 0.0
  %124 = vmatprep.subr.mxu0 0.0
  %125 = vmatpush1.msra.mxu0 0.0
  %126 = vmatprep.subr.mxu0 0.0
  %127 = vmatpush1.msra.mxu0 0.0
  %128 = vmatprep.subr.mxu0 0.0
  %129 = vmatpush1.msra.mxu0 0.0
  %130 = vmatprep.subr.mxu0 0.0
  %131 = vmatpush1.msra.mxu0 0.0
  %132 = vmatprep.subr.mxu0 0.0
  %133 = vmatpush1.msra.mxu0 0.0
  %134 = vmatprep.mubr.f32.mxu0 0.0
  %135 = vmatmul.mubr.f32.gmra.mrb[0].mxu0 %v47
  %v136 = vpop.f32.mrb[0].mxu0
  %v137 = vadd.f32 0.0, %v136
  %v138 = vpop.f32.mrb[0].mxu0
  %139 = vmatprep.mubr.f32.mxu0 0.0
  %140 = vmatmul.mubr.f32.gmra.mrb[0].mxu0 %v50
  %v141 = vpop.f32.mrb[0].mxu0
  %v142 = vadd.f32 0.0, %v141
  %v143 = vpop.f32.mrb[0].mxu0
  %144 = vmatprep.mubr.f32.mxu0 0.0
  %145 = vmatmul.mubr.f32.gmra.mrb[0].mxu0 %v53
  %v146 = vpop.f32.mrb[0].mxu0
  %v147 = vadd.f32 0.0, %v146
  %v148 = vpop.f32.mrb[0].mxu0
  %149 = vmatprep.mubr.f32.mxu0 0.0
  %150 = vmatmul.mubr.f32.gmra.mrb[0].mxu0 %v56
  %v151 = vpop.f32.mrb[0].mxu0
  %v152 = vadd.f32 0.0, %v151
  %v153 = vpop.f32.mrb[0].mxu0
  %154 = vmatprep.mubr.f32.mxu0 0.0
  %155 = vmatmul.mubr.f32.gmra.mrb[0].mxu0 %v59
  %v156 = vpop.f32.mrb[0].mxu0
  %v157 = vadd.f32 0.0, %v156
  %v158 = vpop.f32.mrb[0].mxu0
  %159 = vmatprep.mubr.f32.mxu0 0.0
  %160 = vmatmul.mubr.f32.gmra.mrb[0].mxu0 %v62
  %v161 = vpop.f32.mrb[0].mxu0
  %v162 = vadd.f32 0.0, %v161
  %v163 = vpop.f32.mrb[0].mxu0
  %164 = vmatprep.mubr.f32.mxu0 0.0
  %165 = vmatmul.mubr.f32.gmra.mrb[0].mxu0 %v65
  %v166 = vpop.f32.mrb[0].mxu0
  %v167 = vadd.f32 0.0, %v166
  %v168 = vpop.f32.mrb[0].mxu0
  %169 = vmatprep.mubr.f32.mxu0 0.0
  %170 = vmatmul.mubr.f32.gmra.mrb[0].mxu0 %v68
  %v171 = vpop.f32.mrb[0].mxu0
  %v172 = vadd.f32 0.0, %v171
  %v173 = vpop.f32.mrb[0].mxu0
  %174 = vdwg.mxu0
  %vm175 = vcmask 64512
  %v177 = vsel %vm175, %v26, 0
  %v180 = vsel %vm175, %v27, 0
  %v183 = vsel %vm175, %v28, 0
  %v186 = vsel %vm175, %v29, 0
  %v189 = vsel %vm175, %v30, 0
  %v192 = vsel %vm175, %v31, 0
  %v195 = vsel %vm175, %v32, 0
  %v198 = vsel %vm175, %v33, 0
  %200 = vmatprep.subr.mxu0 0.0
  %201 = vmatpush1.msra.mxu0 %v42
  %202 = vmatprep.subr.mxu0 0.0
  %203 = vmatpush1.msra.mxu0 0.0
  %204 = vmatprep.subr.mxu0 0.0
  %205 = vmatpush1.msra.mxu0 0.0
  %206 = vmatprep.subr.mxu0 0.0
  %207 = vmatpush1.msra.mxu0 0.0
  %208 = vmatprep.subr.mxu0 0.0
  %209 = vmatpush1.msra.mxu0 0.0
  %210 = vmatprep.subr.mxu0 0.0
  %211 = vmatpush1.msra.mxu0 0.0
  %212 = vmatprep.subr.mxu0 0.0
  %213 = vmatpush1.msra.mxu0 0.0
  %214 = vmatprep.subr.mxu0 0.0
  %215 = vmatpush1.msra.mxu0 0.0
  %216 = vmatprep.subr.mxu0 0.0
  %217 = vmatpush1.msra.mxu0 0.0
  %218 = vmatprep.subr.mxu0 0.0
  %219 = vmatpush1.msra.mxu0 0.0
  %220 = vmatprep.subr.mxu0 0.0
  %221 = vmatpush1.msra.mxu0 0.0
  %222 = vmatprep.subr.mxu0 0.0
  %223 = vmatpush1.msra.mxu0 0.0
  %224 = vmatprep.subr.mxu0 0.0
  %225 = vmatpush1.msra.mxu0 0.0
  %226 = vmatprep.subr.mxu0 0.0
  %227 = vmatpush1.msra.mxu0 0.0
  %228 = vmatprep.subr.mxu0 0.0
  %229 = vmatpush1.msra.mxu0 0.0
  %230 = vmatprep.subr.mxu0 0.0
  %231 = vmatpush1.msra.mxu0 0.0
  %232 = vmatprep.subr.mxu0 0.0
  %233 = vmatpush1.msra.mxu0 0.0
  %234 = vmatprep.subr.mxu0 0.0
  %235 = vmatpush1.msra.mxu0 0.0
  %236 = vmatprep.subr.mxu0 0.0
  %237 = vmatpush1.msra.mxu0 0.0
  %238 = vmatprep.subr.mxu0 0.0
  %239 = vmatpush1.msra.mxu0 0.0
  %240 = vmatprep.subr.mxu0 0.0
  %241 = vmatpush1.msra.mxu0 0.0
  %242 = vmatprep.subr.mxu0 0.0
  %243 = vmatpush1.msra.mxu0 0.0
  %244 = vmatprep.subr.mxu0 0.0
  %245 = vmatpush1.msra.mxu0 0.0
  %246 = vmatprep.subr.mxu0 0.0
  %247 = vmatpush1.msra.mxu0 0.0
  %248 = vmatprep.subr.mxu0 0.0
  %249 = vmatpush1.msra.mxu0 0.0
  %250 = vmatprep.subr.mxu0 0.0
  %251 = vmatpush1.msra.mxu0 0.0
  %252 = vmatprep.subr.mxu0 0.0
  %253 = vmatpush1.msra.mxu0 0.0
  %254 = vmatprep.subr.mxu0 0.0
  %255 = vmatpush1.msra.mxu0 0.0
  %256 = vmatprep.subr.mxu0 0.0
  %257 = vmatpush1.msra.mxu0 0.0
  %258 = vmatprep.subr.mxu0 0.0
  %259 = vmatpush1.msra.mxu0 0.0
  %260 = vmatprep.subr.mxu0 0.0
  %261 = vmatpush1.msra.mxu0 0.0
  %262 = vmatprep.subr.mxu0 0.0
  %263 = vmatpush1.msra.mxu0 0.0
  %264 = vmatprep.mubr.f32.mxu0 0.0
  %265 = vmatmul.mubr.f32.gmra.mrb[0].mxu0 %v177
  %v266 = vpop.f32.mrb[0].mxu0
  %v267 = vadd.f32 %v137, %v266
  %v268 = vpop.f32.mrb[0].mxu0
  %269 = vmatprep.mubr.f32.mxu0 0.0
  %270 = vmatmul.mubr.f32.gmra.mrb[0].mxu0 %v180
  %v271 = vpop.f32.mrb[0].mxu0
  %v272 = vadd.f32 %v142, %v271
  %v273 = vpop.f32.mrb[0].mxu0
  %274 = vmatprep.mubr.f32.mxu0 0.0
  %275 = vmatmul.mubr.f32.gmra.mrb[0].mxu0 %v183
  %v276 = vpop.f32.mrb[0].mxu0
  %v277 = vadd.f32 %v147, %v276
  %v278 = vpop.f32.mrb[0].mxu0
  %279 = vmatprep.mubr.f32.mxu0 0.0
  %280 = vmatmul.mubr.f32.gmra.mrb[0].mxu0 %v186
  %v281 = vpop.f32.mrb[0].mxu0
  %v282 = vadd.f32 %v152, %v281
  %v283 = vpop.f32.mrb[0].mxu0
  %284 = vmatprep.mubr.f32.mxu0 0.0
  %285 = vmatmul.mubr.f32.gmra.mrb[0].mxu0 %v189
  %v286 = vpop.f32.mrb[0].mxu0
  %v287 = vadd.f32 %v157, %v286
  %v288 = vpop.f32.mrb[0].mxu0
  %289 = vmatprep.mubr.f32.mxu0 0.0
  %290 = vmatmul.mubr.f32.gmra.mrb[0].mxu0 %v192
  %v291 = vpop.f32.mrb[0].mxu0
  %v292 = vadd.f32 %v162, %v291
  %v293 = vpop.f32.mrb[0].mxu0
  %294 = vmatprep.mubr.f32.mxu0 0.0
  %295 = vmatmul.mubr.f32.gmra.mrb[0].mxu0 %v195
  %v296 = vpop.f32.mrb[0].mxu0
  %v297 = vadd.f32 %v167, %v296
  %v298 = vpop.f32.mrb[0].mxu0
  %299 = vmatprep.mubr.f32.mxu0 0.0
  %300 = vmatmul.mubr.f32.gmra.mrb[0].mxu0 %v198
  %v301 = vpop.f32.mrb[0].mxu0
  %v302 = vadd.f32 %v172, %v301
  %v303 = vpop.f32.mrb[0].mxu0
  %304 = vdwg.mxu0
  %v305 = vld [vmem:[%s4] sm:$0x1]
  %v307 = vlaneseq
  %v308 = vshrl.u32 %v307, 7
  %v309 = vsub.s32 0, %v308
  %v310 = vrot.slane %v305, %v309
  %v312 = vadd.f32 %v267, %v310
  %v313 = vadd.f32 %v272, %v310
  %v314 = vadd.f32 %v277, %v310
  %v315 = vadd.f32 %v282, %v310
  %v316 = vadd.f32 %v287, %v310
  %v317 = vadd.f32 %v292, %v310
  %v318 = vadd.f32 %v297, %v310
  %v319 = vadd.f32 %v302, %v310
  %v320 = vld [vmem:[%s5] sm:$0x1]
  %v322 = vlaneseq
  %v323 = vshrl.u32 %v322, 7
  %v324 = vsub.s32 0, %v323
  %v325 = vrot.slane %v320, %v324
  %v327 = vmul.f32 %v312, %v325
  %v328 = vmul.f32 %v313, %v325
  %v329 = vmul.f32 %v314, %v325
  %v330 = vmul.f32 %v315, %v325
  %v331 = vmul.f32 %v316, %v325
  %v332 = vmul.f32 %v317, %v325
  %v333 = vmul.f32 %v318, %v325
  %v334 = vmul.f32 %v319, %v325
  %v335 = vmax.f32 %v312, %v327
  %v336 = vmax.f32 %v313, %v328
  %v337 = vmax.f32 %v314, %v329
  %v338 = vmax.f32 %v315, %v330
  %v339 = vmax.f32 %v316, %v331
  %v340 = vmax.f32 %v317, %v332
  %v341 = vmax.f32 %v318, %v333
  %v342 = vmax.f32 %v319, %v334
  %v343 = vsel %vm175, %v26, 0.0
  %344 = vadd.xlane.f32.xlu0 %v343
  %v345 = vpop.xlane.xlu0 %344
  %v346 = vsel %vm175, %v27, 0.0
  %347 = vadd.xlane.f32.xlu0 %v346
  %v348 = vpop.xlane.xlu0 %347
  %v349 = vsel %vm175, %v28, 0.0
  %350 = vadd.xlane.f32.xlu0 %v349
  %v351 = vpop.xlane.xlu0 %350
  %v352 = vsel %vm175, %v29, 0.0
  %353 = vadd.xlane.f32.xlu0 %v352
  %v354 = vpop.xlane.xlu0 %353
  %v355 = vsel %vm175, %v30, 0.0
  %356 = vadd.xlane.f32.xlu0 %v355
  %v357 = vpop.xlane.xlu0 %356
  %v358 = vsel %vm175, %v31, 0.0
  %359 = vadd.xlane.f32.xlu0 %v358
  %v360 = vpop.xlane.xlu0 %359
  %v361 = vsel %vm175, %v32, 0.0
  %362 = vadd.xlane.f32.xlu0 %v361
  %v363 = vpop.xlane.xlu0 %362
  %v364 = vsel %vm175, %v33, 0.0
  %365 = vadd.xlane.f32.xlu0 %v364
  %v366 = vpop.xlane.xlu0 %365
  %v367 = vsel %vm45, %v34, 0.0
  %368 = vadd.xlane.f32.xlu0 %v367
  %v369 = vpop.xlane.xlu0 %368
  %v370 = vsel %vm45, %v35, 0.0
  %371 = vadd.xlane.f32.xlu0 %v370
  %v372 = vpop.xlane.xlu0 %371
  %v373 = vsel %vm45, %v36, 0.0
  %374 = vadd.xlane.f32.xlu0 %v373
  %v375 = vpop.xlane.xlu0 %374
  %v376 = vsel %vm45, %v37, 0.0
  %377 = vadd.xlane.f32.xlu0 %v376
  %v378 = vpop.xlane.xlu0 %377
  %v379 = vsel %vm45, %v38, 0.0
  %380 = vadd.xlane.f32.xlu0 %v379
  %v381 = vpop.xlane.xlu0 %380
  %v382 = vsel %vm45, %v39, 0.0
  %383 = vadd.xlane.f32.xlu0 %v382
  %v384 = vpop.xlane.xlu0 %383
  %v385 = vsel %vm45, %v40, 0.0
  %386 = vadd.xlane.f32.xlu0 %v385
  %v387 = vpop.xlane.xlu0 %386
  %v388 = vsel %vm45, %v41, 0.0
  %389 = vadd.xlane.f32.xlu0 %v388
  %v390 = vpop.xlane.xlu0 %389
  %v391 = vadd.f32 %v345, %v369
  %v392 = vadd.f32 %v348, %v372
  %v393 = vadd.f32 %v351, %v375
  %v394 = vadd.f32 %v354, %v378
  %v395 = vadd.f32 %v357, %v381
  %v396 = vadd.f32 %v360, %v384
  %v397 = vadd.f32 %v363, %v387
  %v398 = vadd.f32 %v366, %v390
  %v399 = vmul.f32 %v26, %v26
  %v400 = vmul.f32 %v27, %v27
  %v401 = vmul.f32 %v28, %v28
  %v402 = vmul.f32 %v29, %v29
  %v403 = vmul.f32 %v30, %v30
  %v404 = vmul.f32 %v31, %v31
  %v405 = vmul.f32 %v32, %v32
  %v406 = vmul.f32 %v33, %v33
  %v407 = vsel %vm175, %v399, 0.0
  %408 = vadd.xlane.f32.xlu0 %v407
  %v409 = vpop.xlane.xlu0 %408
  %v410 = vsel %vm175, %v400, 0.0
  %411 = vadd.xlane.f32.xlu0 %v410
  %v412 = vpop.xlane.xlu0 %411
  %v413 = vsel %vm175, %v401, 0.0
  %414 = vadd.xlane.f32.xlu0 %v413
  %v415 = vpop.xlane.xlu0 %414
  %v416 = vsel %vm175, %v402, 0.0
  %417 = vadd.xlane.f32.xlu0 %v416
  %v418 = vpop.xlane.xlu0 %417
  %v419 = vsel %vm175, %v403, 0.0
  %420 = vadd.xlane.f32.xlu0 %v419
  %v421 = vpop.xlane.xlu0 %420
  %v422 = vsel %vm175, %v404, 0.0
  %423 = vadd.xlane.f32.xlu0 %v422
  %v424 = vpop.xlane.xlu0 %423
  %v425 = vsel %vm175, %v405, 0.0
  %426 = vadd.xlane.f32.xlu0 %v425
  %v427 = vpop.xlane.xlu0 %426
  %v428 = vsel %vm175, %v406, 0.0
  %429 = vadd.xlane.f32.xlu0 %v428
  %v430 = vpop.xlane.xlu0 %429
  %v431 = vmul.f32 %v34, %v34
  %v432 = vmul.f32 %v35, %v35
  %v433 = vmul.f32 %v36, %v36
  %v434 = vmul.f32 %v37, %v37
  %v435 = vmul.f32 %v38, %v38
  %v436 = vmul.f32 %v39, %v39
  %v437 = vmul.f32 %v40, %v40
  %v438 = vmul.f32 %v41, %v41
  %v439 = vsel %vm45, %v431, 0.0
  %440 = vadd.xlane.f32.xlu0 %v439
  %v441 = vpop.xlane.xlu0 %440
  %v442 = vsel %vm45, %v432, 0.0
  %443 = vadd.xlane.f32.xlu0 %v442
  %v444 = vpop.xlane.xlu0 %443
  %v445 = vsel %vm45, %v433, 0.0
  %446 = vadd.xlane.f32.xlu0 %v445
  %v447 = vpop.xlane.xlu0 %446
  %v448 = vsel %vm45, %v434, 0.0
  %449 = vadd.xlane.f32.xlu0 %v448
  %v450 = vpop.xlane.xlu0 %449
  %v451 = vsel %vm45, %v435, 0.0
  %452 = vadd.xlane.f32.xlu0 %v451
  %v453 = vpop.xlane.xlu0 %452
  %v454 = vsel %vm45, %v436, 0.0
  %455 = vadd.xlane.f32.xlu0 %v454
  %v456 = vpop.xlane.xlu0 %455
  %v457 = vsel %vm45, %v437, 0.0
  %458 = vadd.xlane.f32.xlu0 %v457
  %v459 = vpop.xlane.xlu0 %458
  %v460 = vsel %vm45, %v438, 0.0
  %461 = vadd.xlane.f32.xlu0 %v460
  %v462 = vpop.xlane.xlu0 %461
  %v463 = vadd.f32 %v409, %v441
  %v464 = vadd.f32 %v412, %v444
  %v465 = vadd.f32 %v415, %v447
  %v466 = vadd.f32 %v418, %v450
  %v467 = vadd.f32 %v421, %v453
  %v468 = vadd.f32 %v424, %v456
  %v469 = vadd.f32 %v427, %v459
  %v470 = vadd.f32 %v430, %v462
  %v471 = vmul.f32 %v391, %v391
  %v472 = vmul.f32 %v392, %v392
  %v473 = vmul.f32 %v393, %v393
  %v474 = vmul.f32 %v394, %v394
  %v475 = vmul.f32 %v395, %v395
  %v476 = vmul.f32 %v396, %v396
  %v477 = vmul.f32 %v397, %v397
  %v478 = vmul.f32 %v398, %v398
  %v479 = vsub.f32 %v471, %v463
  %v480 = vsub.f32 %v472, %v464
  %v481 = vsub.f32 %v473, %v465
  %v482 = vsub.f32 %v474, %v466
  %v483 = vsub.f32 %v475, %v467
  %v484 = vsub.f32 %v476, %v468
  %v485 = vsub.f32 %v477, %v469
  %v486 = vsub.f32 %v478, %v470
  %v487 = vmul.f32 %v479, 0.5
  %v488 = vmul.f32 %v480, 0.5
  %v489 = vmul.f32 %v481, 0.5
  %v490 = vmul.f32 %v482, 0.5
  %v491 = vmul.f32 %v483, 0.5
  %v492 = vmul.f32 %v484, 0.5
  %v493 = vmul.f32 %v485, 0.5
  %v494 = vmul.f32 %v486, 0.5
  %v495 = vld [vmem:[%s6] sm:$0x1]
  %v497 = vlaneseq
  %v498 = vshrl.u32 %v497, 7
  %v499 = vsub.s32 0, %v498
  %v500 = vrot.slane %v495, %v499
  %v502 = vmul.f32 %v487, %v500
  %v503 = vmul.f32 %v488, %v500
  %v504 = vmul.f32 %v489, %v500
  %v505 = vmul.f32 %v490, %v500
  %v506 = vmul.f32 %v491, %v500
  %v507 = vmul.f32 %v492, %v500
  %v508 = vmul.f32 %v493, %v500
  %v509 = vmul.f32 %v494, %v500
  %v510 = vadd.f32 %v335, %v502
  %v511 = vadd.f32 %v336, %v503
  %v512 = vadd.f32 %v337, %v504
  %v513 = vadd.f32 %v338, %v505
  %v514 = vadd.f32 %v339, %v506
  %v515 = vadd.f32 %v340, %v507
  %v516 = vadd.f32 %v341, %v508
  %v517 = vadd.f32 %v342, %v509
  %vm518 = vcmask 203776
  %519 = vst.msk [vmem:[%s7] sm:$0xff] %vm518, %v510
  %520 = vst.msk [vmem:[%s7 + $0x8] sm:$0xff] %vm518, %v511
  %521 = vst.msk [vmem:[%s7 + $0x10] sm:$0xff] %vm518, %v512
  %522 = vst.msk [vmem:[%s7 + $0x18] sm:$0xff] %vm518, %v513
  %523 = vst.msk [vmem:[%s7 + $0x20] sm:$0xff] %vm518, %v514
  %524 = vst.msk [vmem:[%s7 + $0x28] sm:$0xff] %vm518, %v515
  %525 = vst.msk [vmem:[%s7 + $0x30] sm:$0xff] %vm518, %v516
  %526 = vst.msk [vmem:[%s7 + $0x38] sm:$0xff] %vm518, %v517
  // Predicated region
  $region30: #{fm_interaction_arch.1} parent=0 // pred_check
    _
  $region31: #{fm_interaction_arch.1} parent=0 // pred_check_branch
    %528 = sbr.rel (0) target = $region33
  $region32: #{fm_interaction_arch.1} parent=0 // pred_region
    _
  $region33: #{fm_interaction_arch.1} parent=0 // pred_fallthru
    _
  // Predicated region
  $region34: #{fm_interaction_arch.1} parent=0 // pred_check
    _
  $region35: #{fm_interaction_arch.1} parent=0 // pred_check_branch
    %530 = sbr.rel (0) target = $region37
  $region36: #{fm_interaction_arch.1} parent=0 // pred_region
    _
  $region37: #{fm_interaction_arch.1} parent=0 // pred_fallthru
    _

</llo_original>
